<compile_context>
chip_gen: v7x
topology: tpu7x:2x2x1
jax: 0.10.0
libtpu: 0.0.40
codegen_flags: <defaults>
</compile_context>

<pallas_src>
import math
import jax
import jax.numpy as jnp
from jax.experimental import pallas as pl
from jax.experimental.pallas import tpu as pltpu


def _round_up(n, m):
    return ((n + m - 1) // m) * m


def _fc3_kernel(x_ref, w1, b1, w2, b2, w3, b3, w4, b4, o_ref):
    """One (TB, F) batch tile through the 4-layer MLP, weights VMEM-resident.

    x_ref : (TB, F) f32 activation tile (pipelined over the batch grid)
    w*    : bf16 weights, natural (in, out) shapes, resident in VMEM
    b*    : (1, out) f32 biases, resident in VMEM
    o_ref : (TB, F) f32 output tile
    """
    f32 = jnp.float32
    bf16 = jnp.bfloat16

    h = x_ref[...]  # f32

    # Layers 1-3: Linear (bf16 operands, f32 accumulate on the MXU) + bias + ReLU.
    h = jnp.dot(h.astype(bf16), w1[...], preferred_element_type=f32) + b1[...]
    h = jnp.maximum(h, 0.0)
    h = jnp.dot(h.astype(bf16), w2[...], preferred_element_type=f32) + b2[...]
    h = jnp.maximum(h, 0.0)
    h = jnp.dot(h.astype(bf16), w3[...], preferred_element_type=f32) + b3[...]
    h = jnp.maximum(h, 0.0)

    # Layer 4: Linear + Sigmoid.  sigmoid(z) == 0.5*(tanh(z/2)+1): single EUP op,
    # exact formulation (no approximate reciprocal).
    z = jnp.dot(h.astype(bf16), w4[...], preferred_element_type=f32) + b4[...]
    o_ref[...] = (0.5 * (jnp.tanh(0.5 * z) + 1.0)).astype(o_ref.dtype)


def prepare_fc3_params(params):
    """One-time prep: weights -> bf16 (MXU operand dtype), biases -> (1, out) f32."""
    return {
        "w1": params["w1"].astype(jnp.bfloat16),
        "w2": params["w2"].astype(jnp.bfloat16),
        "w3": params["w3"].astype(jnp.bfloat16),
        "w4": params["w4"].astype(jnp.bfloat16),
        "b1": params["b1"].reshape(1, -1).astype(jnp.float32),
        "b2": params["b2"].reshape(1, -1).astype(jnp.float32),
        "b3": params["b3"].reshape(1, -1).astype(jnp.float32),
        "b4": params["b4"].reshape(1, -1).astype(jnp.float32),
    }


def fc3_forward(x, prepared, *, block_batch=4096, min_grid_steps=2):
    """x: (B, F) float32.  prepared: output of prepare_fc3_params."""
    B, F = x.shape

    # Batch tile: multiple of 8 sublanes; aim for >= min_grid_steps grid steps so
    # v7x's two TensorCores both get work; cap at block_batch for VMEM headroom
    # (with (TB, F=16) f32 tiles even TB=4096 double-buffered is < 1 MiB).
    tb_target = max(8, _round_up(pl.cdiv(B, min_grid_steps), 8))
    TB = max(8, min(block_batch, tb_target, _round_up(B, 8)))
    grid = (pl.cdiv(B, TB),)  # partial last block is masked on store

    resident = pl.BlockSpec(memory_space=pltpu.MemorySpace.VMEM)  # single-buffered, whole array

    out = pl.pallas_call(
        _fc3_kernel,
        out_shape=jax.ShapeDtypeStruct((B, F), jnp.float32),
        grid=grid,
        in_specs=[
            pl.BlockSpec((TB, F), lambda i: (i, 0)),  # activation tile (pipelined)
            resident, resident,                       # w1, b1
            resident, resident,                       # w2, b2
            resident, resident,                       # w3, b3
            resident, resident,                       # w4, b4
        ],
        out_specs=pl.BlockSpec((TB, F), lambda i: (i, 0)),
        compiler_params=pltpu.CompilerParams(
            dimension_semantics=("parallel",),
        ),
    )(
        x,
        prepared["w1"], prepared["b1"],
        prepared["w2"], prepared["b2"],
        prepared["w3"], prepared["b3"],
        prepared["w4"], prepared["b4"],
    )
    return out


def init_fc3_params(key, hidden_size, stft_features):
    """Xavier-normal weights, zero biases (mirrors torch initialize_weights)."""
    def xavier_normal(k, fan_in, fan_out):
        std = math.sqrt(2.0 / (fan_in + fan_out))
        return std * jax.random.normal(k, (fan_in, fan_out), dtype=jnp.float32)

    k1, k2, k3, k4 = jax.random.split(key, 4)
    H, F = hidden_size, stft_features
    return {
        "w1": xavier_normal(k1, F, H), "b1": jnp.zeros((1, H), jnp.float32),
        "w2": xavier_normal(k2, H, H), "b2": jnp.zeros((1, H), jnp.float32),
        "w3": xavier_normal(k3, H, H), "b3": jnp.zeros((1, H), jnp.float32),
        "w4": xavier_normal(k4, H, F), "b4": jnp.zeros((1, F), jnp.float32),
    }


def _reference_f32(x, p):
    """Plain-JAX f32 reference for the same forward pass (exact sigmoid)."""
    h = jnp.maximum(x @ p["w1"] + p["b1"], 0.0)
    h = jnp.maximum(h @ p["w2"] + p["b2"], 0.0)
    h = jnp.maximum(h @ p["w3"] + p["b3"], 0.0)
    return jax.nn.sigmoid(h @ p["w4"] + p["b4"])


if __name__ == "__main__":
    hidden_size = 32
    stft_features = 16
    batch = 100  # not a multiple of the tile -> exercises the masked partial block

    key = jax.random.PRNGKey(0)
    k_x, k_p = jax.random.split(key)
    x = jax.random.normal(k_x, (batch, stft_features), dtype=jnp.float32)
    params = init_fc3_params(k_p, hidden_size, stft_features)

    prepared = prepare_fc3_params(params)
    # block_batch=32 -> TB=32, grid=(4,): several pipelined steps with resident weights
    # and a partial (4-row) final block.
    out = fc3_forward(x, prepared, block_batch=32)
    out = jax.block_until_ready(out)

    ref = _reference_f32(x, params)
    assert out.shape == (batch, stft_features)
    # bf16 matmul operands (f32 accumulation) vs. the f32 reference: observed error is
    # well below 1e-2 for Xavier-scaled weights and sigmoid-compressed outputs.
    err = float(jnp.max(jnp.abs(out - ref)))
    assert jnp.allclose(out, ref, atol=2e-2, rtol=2e-2), err

    print("KERNEL_OK")
</pallas_src>

<mosaic_0001>
module attributes {stable_mosaic.version = 11 : i64} {
  func.func @_fc3_kernel(%arg0: i32, %arg1: memref<32x16xf32, #tpu.memory_space<vmem>>, %arg2: memref<16x32xbf16, #tpu.memory_space<vmem>>, %arg3: memref<1x32xf32, #tpu.memory_space<vmem>>, %arg4: memref<32x32xbf16, #tpu.memory_space<vmem>>, %arg5: memref<1x32xf32, #tpu.memory_space<vmem>>, %arg6: memref<32x32xbf16, #tpu.memory_space<vmem>>, %arg7: memref<1x32xf32, #tpu.memory_space<vmem>>, %arg8: memref<32x16xbf16, #tpu.memory_space<vmem>>, %arg9: memref<1x16xf32, #tpu.memory_space<vmem>>, %arg10: memref<32x16xf32, #tpu.memory_space<vmem>>) attributes {dimension_semantics = [#tpu.dimension_semantics<parallel>], iteration_bounds = array<i64: 4>, scalar_prefetch = 0 : i64, scratch_operands = 0 : i64, tpu.core_type = #tpu.core_type<tc>, window_params = [{transform_indices = @transform_0, window_bounds = array<i64: 32, 16>}, {pipeline_mode = #tpu.pipeline_mode<synchronous>, transform_indices = @transform_1, window_bounds = array<i64: 16, 32>}, {pipeline_mode = #tpu.pipeline_mode<synchronous>, transform_indices = @transform_2, window_bounds = array<i64: 1, 32>}, {pipeline_mode = #tpu.pipeline_mode<synchronous>, transform_indices = @transform_3, window_bounds = array<i64: 32, 32>}, {pipeline_mode = #tpu.pipeline_mode<synchronous>, transform_indices = @transform_4, window_bounds = array<i64: 1, 32>}, {pipeline_mode = #tpu.pipeline_mode<synchronous>, transform_indices = @transform_5, window_bounds = array<i64: 32, 32>}, {pipeline_mode = #tpu.pipeline_mode<synchronous>, transform_indices = @transform_6, window_bounds = array<i64: 1, 32>}, {pipeline_mode = #tpu.pipeline_mode<synchronous>, transform_indices = @transform_7, window_bounds = array<i64: 32, 16>}, {pipeline_mode = #tpu.pipeline_mode<synchronous>, transform_indices = @transform_8, window_bounds = array<i64: 1, 16>}, {transform_indices = @transform_9, window_bounds = array<i64: 32, 16>}]} {
    %c0 = arith.constant 0 : index
    %c0_0 = arith.constant 0 : index
    %0 = vector.load %arg1[%c0, %c0_0] : memref<32x16xf32, #tpu.memory_space<vmem>>, vector<32x16xf32>
    %1 = arith.truncf %0 : vector<32x16xf32> to vector<32x16xbf16>
    %c0_1 = arith.constant 0 : index
    %c0_2 = arith.constant 0 : index
    %2 = vector.load %arg2[%c0_1, %c0_2] : memref<16x32xbf16, #tpu.memory_space<vmem>>, vector<16x32xbf16>
    %cst = arith.constant dense<0.000000e+00> : vector<32x32xf32>
    %3 = tpu.matmul %1, %2, %cst {dimension_numbers = #tpu.dot_dimension_numbers<[1], [0], [0], [1], [0, 0, 1, 1], [], []>} : vector<32x16xbf16>, vector<16x32xbf16>, vector<32x32xf32> -> vector<32x32xf32>
    %c0_3 = arith.constant 0 : index
    %c0_4 = arith.constant 0 : index
    %4 = vector.load %arg3[%c0_3, %c0_4] : memref<1x32xf32, #tpu.memory_space<vmem>>, vector<1x32xf32>
    %5 = vector.broadcast %4 : vector<1x32xf32> to vector<32x32xf32>
    %6 = arith.addf %3, %5 : vector<32x32xf32>
    %cst_5 = arith.constant 0.000000e+00 : f32
    %7 = vector.broadcast %cst_5 : f32 to vector<32x32xf32>
    %8 = arith.maximumf %6, %7 : vector<32x32xf32>
    %9 = arith.truncf %8 : vector<32x32xf32> to vector<32x32xbf16>
    %c0_6 = arith.constant 0 : index
    %c0_7 = arith.constant 0 : index
    %10 = vector.load %arg4[%c0_6, %c0_7] : memref<32x32xbf16, #tpu.memory_space<vmem>>, vector<32x32xbf16>
    %cst_8 = arith.constant dense<0.000000e+00> : vector<32x32xf32>
    %11 = tpu.matmul %9, %10, %cst_8 {dimension_numbers = #tpu.dot_dimension_numbers<[1], [0], [0], [1], [0, 0, 1, 1], [], []>} : vector<32x32xbf16>, vector<32x32xbf16>, vector<32x32xf32> -> vector<32x32xf32>
    %c0_9 = arith.constant 0 : index
    %c0_10 = arith.constant 0 : index
    %12 = vector.load %arg5[%c0_9, %c0_10] : memref<1x32xf32, #tpu.memory_space<vmem>>, vector<1x32xf32>
    %13 = vector.broadcast %12 : vector<1x32xf32> to vector<32x32xf32>
    %14 = arith.addf %11, %13 : vector<32x32xf32>
    %cst_11 = arith.constant 0.000000e+00 : f32
    %15 = vector.broadcast %cst_11 : f32 to vector<32x32xf32>
    %16 = arith.maximumf %14, %15 : vector<32x32xf32>
    %17 = arith.truncf %16 : vector<32x32xf32> to vector<32x32xbf16>
    %c0_12 = arith.constant 0 : index
    %c0_13 = arith.constant 0 : index
    %18 = vector.load %arg6[%c0_12, %c0_13] : memref<32x32xbf16, #tpu.memory_space<vmem>>, vector<32x32xbf16>
    %cst_14 = arith.constant dense<0.000000e+00> : vector<32x32xf32>
    %19 = tpu.matmul %17, %18, %cst_14 {dimension_numbers = #tpu.dot_dimension_numbers<[1], [0], [0], [1], [0, 0, 1, 1], [], []>} : vector<32x32xbf16>, vector<32x32xbf16>, vector<32x32xf32> -> vector<32x32xf32>
    %c0_15 = arith.constant 0 : index
    %c0_16 = arith.constant 0 : index
    %20 = vector.load %arg7[%c0_15, %c0_16] : memref<1x32xf32, #tpu.memory_space<vmem>>, vector<1x32xf32>
    %21 = vector.broadcast %20 : vector<1x32xf32> to vector<32x32xf32>
    %22 = arith.addf %19, %21 : vector<32x32xf32>
    %cst_17 = arith.constant 0.000000e+00 : f32
    %23 = vector.broadcast %cst_17 : f32 to vector<32x32xf32>
    %24 = arith.maximumf %22, %23 : vector<32x32xf32>
    %25 = arith.truncf %24 : vector<32x32xf32> to vector<32x32xbf16>
    %c0_18 = arith.constant 0 : index
    %c0_19 = arith.constant 0 : index
    %26 = vector.load %arg8[%c0_18, %c0_19] : memref<32x16xbf16, #tpu.memory_space<vmem>>, vector<32x16xbf16>
    %cst_20 = arith.constant dense<0.000000e+00> : vector<32x16xf32>
    %27 = tpu.matmul %25, %26, %cst_20 {dimension_numbers = #tpu.dot_dimension_numbers<[1], [0], [0], [1], [0, 0, 1, 1], [], []>} : vector<32x32xbf16>, vector<32x16xbf16>, vector<32x16xf32> -> vector<32x16xf32>
    %c0_21 = arith.constant 0 : index
    %c0_22 = arith.constant 0 : index
    %28 = vector.load %arg9[%c0_21, %c0_22] : memref<1x16xf32, #tpu.memory_space<vmem>>, vector<1x16xf32>
    %29 = vector.broadcast %28 : vector<1x16xf32> to vector<32x16xf32>
    %30 = arith.addf %27, %29 : vector<32x16xf32>
    %cst_23 = arith.constant 5.000000e-01 : f32
    %31 = vector.broadcast %cst_23 : f32 to vector<32x16xf32>
    %32 = arith.mulf %31, %30 : vector<32x16xf32>
    %33 = math.tanh %32 : vector<32x16xf32>
    %cst_24 = arith.constant 1.000000e+00 : f32
    %34 = vector.broadcast %cst_24 : f32 to vector<32x16xf32>
    %35 = arith.addf %33, %34 : vector<32x16xf32>
    %cst_25 = arith.constant 5.000000e-01 : f32
    %36 = vector.broadcast %cst_25 : f32 to vector<32x16xf32>
    %37 = arith.mulf %36, %35 : vector<32x16xf32>
    %c0_26 = arith.constant 0 : index
    %c0_27 = arith.constant 0 : index
    %38 = vector.load %arg10[%c0_26, %c0_27] : memref<32x16xf32, #tpu.memory_space<vmem>>, vector<32x16xf32>
    tpu.vector_store %arg10[%c0_26, %c0_27], %37 {strides = array<i32>} : memref<32x16xf32, #tpu.memory_space<vmem>>, vector<32x16xf32>,
    return
  }
  func.func @transform_0(%arg0: i32) -> (i32, i32) {
    %c0_i32 = arith.constant 0 : i32
    %c0_i32_0 = arith.constant 0 : i32
    return %arg0, %c0_i32 : i32, i32
  }
  func.func @transform_1(%arg0: i32) -> (i32, i32) {
    %c0_i32 = arith.constant 0 : i32
    %c0_i32_0 = arith.constant 0 : i32
    %c0_i32_1 = arith.constant 0 : i32
    return %c0_i32, %c0_i32_0 : i32, i32
  }
  func.func @transform_2(%arg0: i32) -> (i32, i32) {
    %c0_i32 = arith.constant 0 : i32
    %c0_i32_0 = arith.constant 0 : i32
    %c0_i32_1 = arith.constant 0 : i32
    return %c0_i32, %c0_i32_0 : i32, i32
  }
  func.func @transform_3(%arg0: i32) -> (i32, i32) {
    %c0_i32 = arith.constant 0 : i32
    %c0_i32_0 = arith.constant 0 : i32
    %c0_i32_1 = arith.constant 0 : i32
    return %c0_i32, %c0_i32_0 : i32, i32
  }
  func.func @transform_4(%arg0: i32) -> (i32, i32) {
    %c0_i32 = arith.constant 0 : i32
    %c0_i32_0 = arith.constant 0 : i32
    %c0_i32_1 = arith.constant 0 : i32
    return %c0_i32, %c0_i32_0 : i32, i32
  }
  func.func @transform_5(%arg0: i32) -> (i32, i32) {
    %c0_i32 = arith.constant 0 : i32
    %c0_i32_0 = arith.constant 0 : i32
    %c0_i32_1 = arith.constant 0 : i32
    return %c0_i32, %c0_i32_0 : i32, i32
  }
  func.func @transform_6(%arg0: i32) -> (i32, i32) {
    %c0_i32 = arith.constant 0 : i32
    %c0_i32_0 = arith.constant 0 : i32
    %c0_i32_1 = arith.constant 0 : i32
    return %c0_i32, %c0_i32_0 : i32, i32
  }
  func.func @transform_7(%arg0: i32) -> (i32, i32) {
    %c0_i32 = arith.constant 0 : i32
    %c0_i32_0 = arith.constant 0 : i32
    %c0_i32_1 = arith.constant 0 : i32
    return %c0_i32, %c0_i32_0 : i32, i32
  }
  func.func @transform_8(%arg0: i32) -> (i32, i32) {
    %c0_i32 = arith.constant 0 : i32
    %c0_i32_0 = arith.constant 0 : i32
    %c0_i32_1 = arith.constant 0 : i32
    return %c0_i32, %c0_i32_0 : i32, i32
  }
  func.func @transform_9(%arg0: i32) -> (i32, i32) {
    %c0_i32 = arith.constant 0 : i32
    %c0_i32_0 = arith.constant 0 : i32
    return %arg0, %c0_i32 : i32, i32
  }
}

</mosaic_0001>

<llo_original>
// kernel: tpu_custom_call.1
$region0: #{tpu_custom_call.1}
  #allocation0 [shape = 'u32[]', space=smem, size = 0x4, offset = 0x4, fixed_abs, tag = 'smem constant byte address 0x4 - core index']
  #allocation1 [shape = 'u32[144,128]{1,0:T(1,128)}', space=vmem, size = 0x12000, scoped, tag = 'internal scratch']
  %s0 = inlined_call_operand.vmem [shape: f32[100,16], index: 0, kind: input, shape index: {}]
  %s1 = inlined_call_operand.vmem [shape: bf16[16,32], index: 1, kind: input, shape index: {}]
  %s2 = inlined_call_operand.vmem [shape: f32[1,32], index: 2, kind: input, shape index: {}]
  %s3 = inlined_call_operand.vmem [shape: bf16[32,32], index: 3, kind: input, shape index: {}]
  %s4 = inlined_call_operand.vmem [shape: f32[1,32], index: 4, kind: input, shape index: {}]
  %s5 = inlined_call_operand.vmem [shape: bf16[32,32], index: 5, kind: input, shape index: {}]
  %s6 = inlined_call_operand.vmem [shape: f32[1,32], index: 6, kind: input, shape index: {}]
  %s7 = inlined_call_operand.vmem [shape: bf16[32,16], index: 7, kind: input, shape index: {}]
  %s8 = inlined_call_operand.vmem [shape: f32[1,16], index: 8, kind: input, shape index: {}]
  %s9 = inlined_call_operand.vmem [shape: f32[100,16], index: 9, kind: output, shape index: {}]
  %s10 = sld [smem:[#allocation0]]
  $region117: #{tpu_custom_call.1} parent=0
    _
  %s12 = ssub.s32 1, %s10
  %s13 = scalar_select 0, %s12, %s10
  $region1: #{tpu_custom_call.1} parent=0
    #allocation2 [shape = 'u8[32768]{0}', space=vmem, size = 0x8000, scoped, tag = 'output window, operand 0']
    loop: start=0, step=1, limit=6
    $region2: #{tpu_custom_call.1} parent=1 // loop_pre_header
      _
    $region3: #{tpu_custom_call.1} parent=1 // loop_header
      %s15 = sphi 0, %s19
      %p16 = scmp.ge.s32.totalorder %s15, 6
      %s25 = sphi 0, %s27
      %s28 = sphi 0, %s25
      %s29 = sphi 0, %s28
      %s45 = sphi 0, %s29
      %s49 = sphi 0, %s49
      %s51 = sphi 0, %s49
      %s52 = sphi 0, %s51
      %s66 = sphi 0, %s52
      %s70 = sphi 0, %s70
      %s72 = sphi 0, %s70
      %s73 = sphi 0, %s72
      %s87 = sphi 0, %s73
      %s91 = sphi 0, %s91
      %s93 = sphi 0, %s91
      %s94 = sphi 0, %s93
      %s108 = sphi 0, %s94
      %s112 = sphi 0, %s112
      %s114 = sphi 0, %s112
      %s115 = sphi 0, %s114
      %s129 = sphi 0, %s115
      %s133 = sphi 0, %s133
      %s135 = sphi 0, %s133
      %s136 = sphi 0, %s135
      %s150 = sphi 0, %s136
      %s154 = sphi 0, %s154
      %s156 = sphi 0, %s154
      %s157 = sphi 0, %s156
      %s171 = sphi 0, %s157
      %s175 = sphi 0, %s175
      %s177 = sphi 0, %s175
      %s178 = sphi 0, %s177
      %s192 = sphi 0, %s178
      %s196 = sphi 0, %s196
      %s198 = sphi 0, %s196
      %s199 = sphi 0, %s198
      %s213 = sphi 0, %s199
      %s219 = sphi 0, %s221
      %s222 = sphi 0, %s219
      %s223 = sphi 0, %s222
      %s239 = sphi 0, %s223
    $region4: #{tpu_custom_call.1} parent=1 // loop_header_branch
      %18 = sbr.rel (%p16) target = $region8
    $region5: #{tpu_custom_call.1} parent=1 // loop_body
      %s20 = ssub.s32 %s15, 1
      %s21 = ssub.s32 %s15, 2
      %s22 = sadd.s32 %s15, 1
      %s23 = ssub.s32 %s15, %s22
      %p24 = scmp.eq.s32.totalorder %s23, 0
      %s26 = sadd.s32 %s25, 1
      %s27 = scalar_select %p24, %s25, %s26
      %p30 = pneg %p24
      %p31 = scmp.eq.s32.totalorder %s15, 3
      %p32 = por %p30, %p31
      %p33 = scmp.ne.s32.totalorder %s25, %s28
      %p34 = scmp.eq.s32.totalorder %s15, 0
      %p35 = por %p33, %p34
      %p36 = scmp.ne.s32.totalorder %s25, %s28
      %p37 = scmp.eq.s32.totalorder %s20, 3
      %p38 = por %p36, %p37
      %p39 = scmp.ne.s32.totalorder %s28, %s29
      %p40 = scmp.eq.s32.totalorder %s20, 0
      %p41 = por %p39, %p40
      %p42 = scmp.ne.s32.totalorder %s28, %s29
      %p43 = scmp.eq.s32.totalorder %s21, 3
      %p44 = por %p42, %p43
      %p46 = scmp.ne.s32.totalorder %s29, %s45
      %p47 = scmp.eq.s32.totalorder %s21, 0
      %p48 = por %p46, %p47
      %s50 = sadd.s32 %s49, 1
      %p53 = scmp.eq.s32.totalorder %s15, 3
      %p54 = scmp.ne.s32.totalorder %s49, %s51
      %p55 = scmp.eq.s32.totalorder %s15, 0
      %p56 = por %p54, %p55
      %p57 = scmp.ne.s32.totalorder %s49, %s51
      %p58 = scmp.eq.s32.totalorder %s20, 3
      %p59 = por %p57, %p58
      %p60 = scmp.ne.s32.totalorder %s51, %s52
      %p61 = scmp.eq.s32.totalorder %s20, 0
      %p62 = por %p60, %p61
      %p63 = scmp.ne.s32.totalorder %s51, %s52
      %p64 = scmp.eq.s32.totalorder %s21, 3
      %p65 = por %p63, %p64
      %p67 = scmp.ne.s32.totalorder %s52, %s66
      %p68 = scmp.eq.s32.totalorder %s21, 0
      %p69 = por %p67, %p68
      %s71 = sadd.s32 %s70, 1
      %p74 = scmp.eq.s32.totalorder %s15, 3
      %p75 = scmp.ne.s32.totalorder %s70, %s72
      %p76 = scmp.eq.s32.totalorder %s15, 0
      %p77 = por %p75, %p76
      %p78 = scmp.ne.s32.totalorder %s70, %s72
      %p79 = scmp.eq.s32.totalorder %s20, 3
      %p80 = por %p78, %p79
      %p81 = scmp.ne.s32.totalorder %s72, %s73
      %p82 = scmp.eq.s32.totalorder %s20, 0
      %p83 = por %p81, %p82
      %p84 = scmp.ne.s32.totalorder %s72, %s73
      %p85 = scmp.eq.s32.totalorder %s21, 3
      %p86 = por %p84, %p85
      %p88 = scmp.ne.s32.totalorder %s73, %s87
      %p89 = scmp.eq.s32.totalorder %s21, 0
      %p90 = por %p88, %p89
      %s92 = sadd.s32 %s91, 1
      %p95 = scmp.eq.s32.totalorder %s15, 3
      %p96 = scmp.ne.s32.totalorder %s91, %s93
      %p97 = scmp.eq.s32.totalorder %s15, 0
      %p98 = por %p96, %p97
      %p99 = scmp.ne.s32.totalorder %s91, %s93
      %p100 = scmp.eq.s32.totalorder %s20, 3
      %p101 = por %p99, %p100
      %p102 = scmp.ne.s32.totalorder %s93, %s94
      %p103 = scmp.eq.s32.totalorder %s20, 0
      %p104 = por %p102, %p103
      %p105 = scmp.ne.s32.totalorder %s93, %s94
      %p106 = scmp.eq.s32.totalorder %s21, 3
      %p107 = por %p105, %p106
      %p109 = scmp.ne.s32.totalorder %s94, %s108
      %p110 = scmp.eq.s32.totalorder %s21, 0
      %p111 = por %p109, %p110
      %s113 = sadd.s32 %s112, 1
      %p116 = scmp.eq.s32.totalorder %s15, 3
      %p117 = scmp.ne.s32.totalorder %s112, %s114
      %p118 = scmp.eq.s32.totalorder %s15, 0
      %p119 = por %p117, %p118
      %p120 = scmp.ne.s32.totalorder %s112, %s114
      %p121 = scmp.eq.s32.totalorder %s20, 3
      %p122 = por %p120, %p121
      %p123 = scmp.ne.s32.totalorder %s114, %s115
      %p124 = scmp.eq.s32.totalorder %s20, 0
      %p125 = por %p123, %p124
      %p126 = scmp.ne.s32.totalorder %s114, %s115
      %p127 = scmp.eq.s32.totalorder %s21, 3
      %p128 = por %p126, %p127
      %p130 = scmp.ne.s32.totalorder %s115, %s129
      %p131 = scmp.eq.s32.totalorder %s21, 0
      %p132 = por %p130, %p131
      %s134 = sadd.s32 %s133, 1
      %p137 = scmp.eq.s32.totalorder %s15, 3
      %p138 = scmp.ne.s32.totalorder %s133, %s135
      %p139 = scmp.eq.s32.totalorder %s15, 0
      %p140 = por %p138, %p139
      %p141 = scmp.ne.s32.totalorder %s133, %s135
      %p142 = scmp.eq.s32.totalorder %s20, 3
      %p143 = por %p141, %p142
      %p144 = scmp.ne.s32.totalorder %s135, %s136
      %p145 = scmp.eq.s32.totalorder %s20, 0
      %p146 = por %p144, %p145
      %p147 = scmp.ne.s32.totalorder %s135, %s136
      %p148 = scmp.eq.s32.totalorder %s21, 3
      %p149 = por %p147, %p148
      %p151 = scmp.ne.s32.totalorder %s136, %s150
      %p152 = scmp.eq.s32.totalorder %s21, 0
      %p153 = por %p151, %p152
      %s155 = sadd.s32 %s154, 1
      %p158 = scmp.eq.s32.totalorder %s15, 3
      %p159 = scmp.ne.s32.totalorder %s154, %s156
      %p160 = scmp.eq.s32.totalorder %s15, 0
      %p161 = por %p159, %p160
      %p162 = scmp.ne.s32.totalorder %s154, %s156
      %p163 = scmp.eq.s32.totalorder %s20, 3
      %p164 = por %p162, %p163
      %p165 = scmp.ne.s32.totalorder %s156, %s157
      %p166 = scmp.eq.s32.totalorder %s20, 0
      %p167 = por %p165, %p166
      %p168 = scmp.ne.s32.totalorder %s156, %s157
      %p169 = scmp.eq.s32.totalorder %s21, 3
      %p170 = por %p168, %p169
      %p172 = scmp.ne.s32.totalorder %s157, %s171
      %p173 = scmp.eq.s32.totalorder %s21, 0
      %p174 = por %p172, %p173
      %s176 = sadd.s32 %s175, 1
      %p179 = scmp.eq.s32.totalorder %s15, 3
      %p180 = scmp.ne.s32.totalorder %s175, %s177
      %p181 = scmp.eq.s32.totalorder %s15, 0
      %p182 = por %p180, %p181
      %p183 = scmp.ne.s32.totalorder %s175, %s177
      %p184 = scmp.eq.s32.totalorder %s20, 3
      %p185 = por %p183, %p184
      %p186 = scmp.ne.s32.totalorder %s177, %s178
      %p187 = scmp.eq.s32.totalorder %s20, 0
      %p188 = por %p186, %p187
      %p189 = scmp.ne.s32.totalorder %s177, %s178
      %p190 = scmp.eq.s32.totalorder %s21, 3
      %p191 = por %p189, %p190
      %p193 = scmp.ne.s32.totalorder %s178, %s192
      %p194 = scmp.eq.s32.totalorder %s21, 0
      %p195 = por %p193, %p194
      %s197 = sadd.s32 %s196, 1
      %p200 = scmp.eq.s32.totalorder %s15, 3
      %p201 = scmp.ne.s32.totalorder %s196, %s198
      %p202 = scmp.eq.s32.totalorder %s15, 0
      %p203 = por %p201, %p202
      %p204 = scmp.ne.s32.totalorder %s196, %s198
      %p205 = scmp.eq.s32.totalorder %s20, 3
      %p206 = por %p204, %p205
      %p207 = scmp.ne.s32.totalorder %s198, %s199
      %p208 = scmp.eq.s32.totalorder %s20, 0
      %p209 = por %p207, %p208
      %p210 = scmp.ne.s32.totalorder %s198, %s199
      %p211 = scmp.eq.s32.totalorder %s21, 3
      %p212 = por %p210, %p211
      %p214 = scmp.ne.s32.totalorder %s199, %s213
      %p215 = scmp.eq.s32.totalorder %s21, 0
      %p216 = por %p214, %p215
      %s217 = ssub.s32 %s15, %s22
      %p218 = scmp.eq.s32.totalorder %s217, 0
      %s220 = sadd.s32 %s219, 1
      %s221 = scalar_select %p218, %s219, %s220
      %p224 = pneg %p218
      %p225 = scmp.eq.s32.totalorder %s15, 3
      %p226 = por %p224, %p225
      %p227 = scmp.ne.s32.totalorder %s219, %s222
      %p228 = scmp.eq.s32.totalorder %s15, 0
      %p229 = por %p227, %p228
      %p230 = scmp.ne.s32.totalorder %s219, %s222
      %p231 = scmp.eq.s32.totalorder %s20, 3
      %p232 = por %p230, %p231
      %p233 = scmp.ne.s32.totalorder %s222, %s223
      %p234 = scmp.eq.s32.totalorder %s20, 0
      %p235 = por %p233, %p234
      %p236 = scmp.ne.s32.totalorder %s222, %s223
      %p237 = scmp.eq.s32.totalorder %s21, 3
      %p238 = por %p236, %p237
      %p240 = scmp.ne.s32.totalorder %s223, %s239
      %p241 = scmp.eq.s32.totalorder %s21, 0
      %p242 = por %p240, %p241
      %p243 = scmp.le.s32.totalorder 1, %s15
      %p244 = scmp.lt.s32.totalorder %s15, 5
      %p245 = pnand %p243, %p244
      %p246 = pneg %p245
      // Predicated region
      $region9: #{tpu_custom_call.1} parent=5 // pred_check
        _
      $region10: #{tpu_custom_call.1} parent=5 // pred_check_branch
        %248 = sbr.rel (%p245) target = $region12
      $region11: #{tpu_custom_call.1} parent=5 // pred_region
        %s249 = ssub.s32 %s15, 1
        // Predicated region
        $region13: #{tpu_custom_call.1} parent=11 // pred_check
          %p250 = pneg %p62
        $region14: #{tpu_custom_call.1} parent=11 // pred_check_branch
          %252 = sbr.rel (%p250) target = $region16
        $region15: #{tpu_custom_call.1} parent=11 // pred_region
          _
        $region16: #{tpu_custom_call.1} parent=11 // pred_fallthru
          _
        // Predicated region
        $region17: #{tpu_custom_call.1} parent=11 // pred_check
          %p253 = pneg %p83
        $region18: #{tpu_custom_call.1} parent=11 // pred_check_branch
          %255 = sbr.rel (%p253) target = $region20
        $region19: #{tpu_custom_call.1} parent=11 // pred_region
          _
        $region20: #{tpu_custom_call.1} parent=11 // pred_fallthru
          _
        // Predicated region
        $region21: #{tpu_custom_call.1} parent=11 // pred_check
          %p256 = pneg %p104
        $region22: #{tpu_custom_call.1} parent=11 // pred_check_branch
          %258 = sbr.rel (%p256) target = $region24
        $region23: #{tpu_custom_call.1} parent=11 // pred_region
          _
        $region24: #{tpu_custom_call.1} parent=11 // pred_fallthru
          _
        // Predicated region
        $region25: #{tpu_custom_call.1} parent=11 // pred_check
          %p259 = pneg %p125
        $region26: #{tpu_custom_call.1} parent=11 // pred_check_branch
          %261 = sbr.rel (%p259) target = $region28
        $region27: #{tpu_custom_call.1} parent=11 // pred_region
          _
        $region28: #{tpu_custom_call.1} parent=11 // pred_fallthru
          _
        // Predicated region
        $region29: #{tpu_custom_call.1} parent=11 // pred_check
          %p262 = pneg %p146
        $region30: #{tpu_custom_call.1} parent=11 // pred_check_branch
          %264 = sbr.rel (%p262) target = $region32
        $region31: #{tpu_custom_call.1} parent=11 // pred_region
          _
        $region32: #{tpu_custom_call.1} parent=11 // pred_fallthru
          _
        // Predicated region
        $region33: #{tpu_custom_call.1} parent=11 // pred_check
          %p265 = pneg %p167
        $region34: #{tpu_custom_call.1} parent=11 // pred_check_branch
          %267 = sbr.rel (%p265) target = $region36
        $region35: #{tpu_custom_call.1} parent=11 // pred_region
          _
        $region36: #{tpu_custom_call.1} parent=11 // pred_fallthru
          _
        // Predicated region
        $region37: #{tpu_custom_call.1} parent=11 // pred_check
          %p268 = pneg %p188
        $region38: #{tpu_custom_call.1} parent=11 // pred_check_branch
          %270 = sbr.rel (%p268) target = $region40
        $region39: #{tpu_custom_call.1} parent=11 // pred_region
          _
        $region40: #{tpu_custom_call.1} parent=11 // pred_fallthru
          _
        // Predicated region
        $region41: #{tpu_custom_call.1} parent=11 // pred_check
          %p271 = pneg %p209
        $region42: #{tpu_custom_call.1} parent=11 // pred_check_branch
          %273 = sbr.rel (%p271) target = $region44
        $region43: #{tpu_custom_call.1} parent=11 // pred_region
          _
        $region44: #{tpu_custom_call.1} parent=11 // pred_fallthru
          _
      $region12: #{tpu_custom_call.1} parent=5 // pred_fallthru
        _
      %p274 = scmp.lt.s32.totalorder %s15, 4
      // Predicated region
      $region45: #{tpu_custom_call.1} parent=5 // pred_check
        %p275 = pneg %p274
      $region46: #{tpu_custom_call.1} parent=5 // pred_check_branch
        %277 = sbr.rel (%p275) target = $region48
      $region47: #{tpu_custom_call.1} parent=5 // pred_region
        // Predicated region
        $region49: #{tpu_custom_call.1} parent=47 // pred_check
          %p278 = pneg %p35
        $region50: #{tpu_custom_call.1} parent=47 // pred_check_branch
          %280 = sbr.rel (%p278) target = $region52
        $region51: #{tpu_custom_call.1} parent=47 // pred_region
          %s281 = smul.u32 4, %s15
          %s282 = ssub.s32 13, %s281
          %p283 = scmp.lt.s32.totalorder %s282, 4
          %s284 = scalar_select %p283, %s282, 4
          %s285 = smul.u32 128, %s284
          %p286 = scmp.lt.s32.totalorder %s281, 12
          %s287 = scalar_select %p286, %s281, 12
          %s288 = smul.addr %s287, 8
          %s289 = scalar_lea.vmem %s0, %s288
          %s290 = smul.u32 4, %s15
          %s291 = ssub.s32 13, %s290
          %p292 = scmp.lt.s32.totalorder %s291, 4
          %s293 = scalar_select %p292, %s291, 4
          %s294 = smul.u32 128, %s293
        $region52: #{tpu_custom_call.1} parent=47 // pred_fallthru
          _
      $region48: #{tpu_custom_call.1} parent=5 // pred_fallthru
        _
      %p295 = scmp.le.s32.totalorder 1, %s15
      %p296 = scmp.lt.s32.totalorder %s15, 5
      %p297 = pnand %p295, %p296
      %p298 = pneg %p297
      // Predicated region
      $region53: #{tpu_custom_call.1} parent=5 // pred_check
        _
      $region54: #{tpu_custom_call.1} parent=5 // pred_check_branch
        %300 = sbr.rel (%p297) target = $region56
      $region55: #{tpu_custom_call.1} parent=5 // pred_region
        %s301 = ssub.s32 %s15, 1
        %s302 = smul.u32 4, %s20
        %s303 = ssub.s32 13, %s302
        %p304 = scmp.lt.s32.totalorder %s303, 4
        %s305 = scalar_select %p304, %s303, 4
        %s306 = smul.u32 128, %s305
        %p307 = scmp.lt.s32.totalorder %s302, 12
        %s308 = scalar_select %p307, %s302, 12
        %s309 = smul.addr %s308, 8
        %s310 = scalar_lea.vmem %s0, %s309
        %p311 = pneg %p41
        %p312 = pneg %p38
        %p313 = pneg %p62
        %p314 = pneg %p59
        %p315 = pneg %p83
        %p316 = pneg %p80
        %p317 = pneg %p104
        %p318 = pneg %p101
        %p319 = pneg %p125
        %p320 = pneg %p122
        %p321 = pneg %p146
        %p322 = pneg %p143
        %p323 = pneg %p167
        %p324 = pneg %p164
        %p325 = pneg %p188
        %p326 = pneg %p185
        %p327 = pneg %p209
        %p328 = pneg %p206
        %p329 = pneg %p235
        %p330 = pneg %p232
        %s331 = sand.u32 %s222, 1
        %s332 = sand.u32 %s222, 1
        %s333 = smul.addr %s332, 32
        %s334 = scalar_lea.vmem [#allocation2], %s333
        %s335 = smul.u32 4, %s20
        %s336 = ssub.s32 13, %s335
        %p337 = scmp.lt.s32.totalorder %s336, 4
        %s338 = scalar_select %p337, %s336, 4
        %s339 = smul.u32 128, %s338
        %p340 = scmp.lt.s32.totalorder %s335, 12
        %s341 = scalar_select %p340, %s335, 12
        %s342 = smul.addr %s341, 8
        %s343 = scalar_lea.vmem %s0, %s342
        %s344 = smul.u32 4, %s20
        %s345 = ssub.s32 13, %s344
        %p346 = scmp.lt.s32.totalorder %s345, 4
        %s347 = scalar_select %p346, %s345, 4
        %s348 = smul.u32 128, %s347
        %s349 = smul.u32 4, %s20
        %s350 = ssub.s32 13, %s349
        %p351 = scmp.lt.s32.totalorder %s350, 4
        %s352 = scalar_select %p351, %s350, 4
        %s353 = smul.u32 128, %s352
        %v355 = vld [vmem:[%s343] sm:$0xff]
        %v356 = vld [vmem:[%s343 + $0x8] sm:$0xff]
        %v357 = vld [vmem:[%s343 + $0x10] sm:$0xff]
        %v358 = vld [vmem:[%s343 + $0x18] sm:$0xff]
        %v359 = vpack.c.bf16 %v356, %v355
        %v360 = vpack.c.bf16 %v358, %v357
        %v361 = vld [vmem:[%s1] sm:$0xf]
        %v362 = vld [vmem:[%s1 + $0x4] sm:$0xf]
        %v363 = vld [vmem:[%s2] sm:$0x1]
        %v365 = vlaneseq
        %v366 = vshrl.u32 %v365, 7
        %v367 = vsub.s32 0, %v366
        %v368 = vrot.slane %v363, %v367
        %v372 = vunpack.c.l.b16 %v361
        %v373 = vunpack.c.l.b16 %v362
        %v374 = vpack.c.b16 %v373, %v372
        %vm376 = vcmask 130048
        %v378 = vsel %vm376, %v359, 0
        %v381 = vsel %vm376, %v360, 0
        %383 = vmatprep.subr.bf16.mxu0 0
        %384 = vmatpush1.bf16.msra.mxu0 %v374
        %385 = vmatprep.subr.bf16.mxu0 0
        %386 = vmatpush1.bf16.msra.mxu0 0
        %387 = vmatprep.subr.bf16.mxu0 0
        %388 = vmatpush1.bf16.msra.mxu0 0
        %389 = vmatprep.subr.bf16.mxu0 0
        %390 = vmatpush1.bf16.msra.mxu0 0
        %391 = vmatprep.subr.bf16.mxu0 0
        %392 = vmatpush1.bf16.msra.mxu0 0
        %393 = vmatprep.subr.bf16.mxu0 0
        %394 = vmatpush1.bf16.msra.mxu0 0
        %395 = vmatprep.subr.bf16.mxu0 0
        %396 = vmatpush1.bf16.msra.mxu0 0
        %397 = vmatprep.subr.bf16.mxu0 0
        %398 = vmatpush1.bf16.msra.mxu0 0
        %399 = vmatprep.subr.bf16.mxu0 0
        %400 = vmatpush1.bf16.msra.mxu0 0
        %401 = vmatprep.subr.bf16.mxu0 0
        %402 = vmatpush1.bf16.msra.mxu0 0
        %403 = vmatprep.subr.bf16.mxu0 0
        %404 = vmatpush1.bf16.msra.mxu0 0
        %405 = vmatprep.subr.bf16.mxu0 0
        %406 = vmatpush1.bf16.msra.mxu0 0
        %407 = vmatprep.subr.bf16.mxu0 0
        %408 = vmatpush1.bf16.msra.mxu0 0
        %409 = vmatprep.subr.bf16.mxu0 0
        %410 = vmatpush1.bf16.msra.mxu0 0
        %411 = vmatprep.subr.bf16.mxu0 0
        %412 = vmatpush1.bf16.msra.mxu0 0
        %413 = vmatprep.subr.bf16.mxu0 0
        %414 = vmatpush1.bf16.msra.mxu0 0
        %415 = vmatprep.mubr.bf16.mxu0 0
        %416 = vmatmul.mubr.bf16.gmra.mrb[0].mxu0 %v378
        %v417 = vpop.f32.mrb[0].mxu0
        %v418 = vadd.f32 %v368, %v417
        %v419 = vpop.f32.mrb[0].mxu0
        %v420 = vpop.f32.mrb[0].mxu0
        %v421 = vadd.f32 %v368, %v420
        %v422 = vpop.f32.mrb[0].mxu0
        %423 = vmatprep.mubr.bf16.mxu0 0
        %424 = vmatmul.mubr.bf16.gmra.mrb[0].mxu0 %v381
        %v425 = vpop.f32.mrb[0].mxu0
        %v426 = vadd.f32 %v368, %v425
        %v427 = vpop.f32.mrb[0].mxu0
        %v428 = vpop.f32.mrb[0].mxu0
        %v429 = vadd.f32 %v368, %v428
        %v430 = vpop.f32.mrb[0].mxu0
        %431 = vdwg.mxu0
        %v432 = vmax.f32 %v418, 0.0
        %v433 = vmax.f32 %v421, 0.0
        %v434 = vmax.f32 %v426, 0.0
        %v435 = vmax.f32 %v429, 0.0
        %v436 = vpack.c.bf16 %v433, %v432
        %v437 = vpack.c.bf16 %v435, %v434
        %v438 = vld [vmem:[%s3] sm:$0xf]
        %v439 = vld [vmem:[%s3 + $0x4] sm:$0xf]
        %v440 = vld [vmem:[%s3 + $0x8] sm:$0xf]
        %v441 = vld [vmem:[%s3 + $0xc] sm:$0xf]
        %v442 = vld [vmem:[%s4] sm:$0x1]
        %v444 = vlaneseq
        %v445 = vshrl.u32 %v444, 7
        %v446 = vsub.s32 0, %v445
        %v447 = vrot.slane %v442, %v446
        %v453 = vunpack.c.l.b16 %v438
        %v454 = vunpack.c.l.b16 %v439
        %v455 = vunpack.c.l.b16 %v440
        %v456 = vunpack.c.l.b16 %v441
        %v457 = vpack.c.b16 %v454, %v453
        %v458 = vpack.c.b16 %v456, %v455
        %vm461 = vcmask 261120
        %v463 = vsel %vm461, %v436, 0
        %v466 = vsel %vm461, %v437, 0
        %468 = vmatprep.subr.bf16.mxu0 0
        %469 = vmatpush1.bf16.msra.mxu0 %v457
        %470 = vmatprep.subr.bf16.mxu0 0
        %471 = vmatpush1.bf16.msra.mxu0 %v458
        %472 = vmatprep.subr.bf16.mxu0 0
        %473 = vmatpush1.bf16.msra.mxu0 0
        %474 = vmatprep.subr.bf16.mxu0 0
        %475 = vmatpush1.bf16.msra.mxu0 0
        %476 = vmatprep.subr.bf16.mxu0 0
        %477 = vmatpush1.bf16.msra.mxu0 0
        %478 = vmatprep.subr.bf16.mxu0 0
        %479 = vmatpush1.bf16.msra.mxu0 0
        %480 = vmatprep.subr.bf16.mxu0 0
        %481 = vmatpush1.bf16.msra.mxu0 0
        %482 = vmatprep.subr.bf16.mxu0 0
        %483 = vmatpush1.bf16.msra.mxu0 0
        %484 = vmatprep.subr.bf16.mxu0 0
        %485 = vmatpush1.bf16.msra.mxu0 0
        %486 = vmatprep.subr.bf16.mxu0 0
        %487 = vmatpush1.bf16.msra.mxu0 0
        %488 = vmatprep.subr.bf16.mxu0 0
        %489 = vmatpush1.bf16.msra.mxu0 0
        %490 = vmatprep.subr.bf16.mxu0 0
        %491 = vmatpush1.bf16.msra.mxu0 0
        %492 = vmatprep.subr.bf16.mxu0 0
        %493 = vmatpush1.bf16.msra.mxu0 0
        %494 = vmatprep.subr.bf16.mxu0 0
        %495 = vmatpush1.bf16.msra.mxu0 0
        %496 = vmatprep.subr.bf16.mxu0 0
        %497 = vmatpush1.bf16.msra.mxu0 0
        %498 = vmatprep.subr.bf16.mxu0 0
        %499 = vmatpush1.bf16.msra.mxu0 0
        %500 = vmatprep.mubr.bf16.mxu0 0
        %501 = vmatmul.mubr.bf16.gmra.mrb[0].mxu0 %v463
        %v502 = vpop.f32.mrb[0].mxu0
        %v503 = vadd.f32 %v447, %v502
        %v504 = vpop.f32.mrb[0].mxu0
        %v505 = vpop.f32.mrb[0].mxu0
        %v506 = vadd.f32 %v447, %v505
        %v507 = vpop.f32.mrb[0].mxu0
        %508 = vmatprep.mubr.bf16.mxu0 0
        %509 = vmatmul.mubr.bf16.gmra.mrb[0].mxu0 %v466
        %v510 = vpop.f32.mrb[0].mxu0
        %v511 = vadd.f32 %v447, %v510
        %v512 = vpop.f32.mrb[0].mxu0
        %v513 = vpop.f32.mrb[0].mxu0
        %v514 = vadd.f32 %v447, %v513
        %v515 = vpop.f32.mrb[0].mxu0
        %516 = vdwg.mxu0
        %v517 = vmax.f32 %v503, 0.0
        %v518 = vmax.f32 %v506, 0.0
        %v519 = vmax.f32 %v511, 0.0
        %v520 = vmax.f32 %v514, 0.0
        %v521 = vpack.c.bf16 %v518, %v517
        %v522 = vpack.c.bf16 %v520, %v519
        %v523 = vld [vmem:[%s5] sm:$0xf]
        %v524 = vld [vmem:[%s5 + $0x4] sm:$0xf]
        %v525 = vld [vmem:[%s5 + $0x8] sm:$0xf]
        %v526 = vld [vmem:[%s5 + $0xc] sm:$0xf]
        %v527 = vld [vmem:[%s6] sm:$0x1]
        %v529 = vlaneseq
        %v530 = vshrl.u32 %v529, 7
        %v531 = vsub.s32 0, %v530
        %v532 = vrot.slane %v527, %v531
        %v538 = vunpack.c.l.b16 %v523
        %v539 = vunpack.c.l.b16 %v524
        %v540 = vunpack.c.l.b16 %v525
        %v541 = vunpack.c.l.b16 %v526
        %v542 = vpack.c.b16 %v539, %v538
        %v543 = vpack.c.b16 %v541, %v540
        %v547 = vsel %vm461, %v521, 0
        %v550 = vsel %vm461, %v522, 0
        %552 = vmatprep.subr.bf16.mxu0 0
        %553 = vmatpush1.bf16.msra.mxu0 %v542
        %554 = vmatprep.subr.bf16.mxu0 0
        %555 = vmatpush1.bf16.msra.mxu0 %v543
        %556 = vmatprep.subr.bf16.mxu0 0
        %557 = vmatpush1.bf16.msra.mxu0 0
        %558 = vmatprep.subr.bf16.mxu0 0
        %559 = vmatpush1.bf16.msra.mxu0 0
        %560 = vmatprep.subr.bf16.mxu0 0
        %561 = vmatpush1.bf16.msra.mxu0 0
        %562 = vmatprep.subr.bf16.mxu0 0
        %563 = vmatpush1.bf16.msra.mxu0 0
        %564 = vmatprep.subr.bf16.mxu0 0
        %565 = vmatpush1.bf16.msra.mxu0 0
        %566 = vmatprep.subr.bf16.mxu0 0
        %567 = vmatpush1.bf16.msra.mxu0 0
        %568 = vmatprep.subr.bf16.mxu0 0
        %569 = vmatpush1.bf16.msra.mxu0 0
        %570 = vmatprep.subr.bf16.mxu0 0
        %571 = vmatpush1.bf16.msra.mxu0 0
        %572 = vmatprep.subr.bf16.mxu0 0
        %573 = vmatpush1.bf16.msra.mxu0 0
        %574 = vmatprep.subr.bf16.mxu0 0
        %575 = vmatpush1.bf16.msra.mxu0 0
        %576 = vmatprep.subr.bf16.mxu0 0
        %577 = vmatpush1.bf16.msra.mxu0 0
        %578 = vmatprep.subr.bf16.mxu0 0
        %579 = vmatpush1.bf16.msra.mxu0 0
        %580 = vmatprep.subr.bf16.mxu0 0
        %581 = vmatpush1.bf16.msra.mxu0 0
        %582 = vmatprep.subr.bf16.mxu0 0
        %583 = vmatpush1.bf16.msra.mxu0 0
        %584 = vmatprep.mubr.bf16.mxu0 0
        %585 = vmatmul.mubr.bf16.gmra.mrb[0].mxu0 %v547
        %v586 = vpop.f32.mrb[0].mxu0
        %v587 = vadd.f32 %v532, %v586
        %v588 = vpop.f32.mrb[0].mxu0
        %v589 = vpop.f32.mrb[0].mxu0
        %v590 = vadd.f32 %v532, %v589
        %v591 = vpop.f32.mrb[0].mxu0
        %592 = vmatprep.mubr.bf16.mxu0 0
        %593 = vmatmul.mubr.bf16.gmra.mrb[0].mxu0 %v550
        %v594 = vpop.f32.mrb[0].mxu0
        %v595 = vadd.f32 %v532, %v594
        %v596 = vpop.f32.mrb[0].mxu0
        %v597 = vpop.f32.mrb[0].mxu0
        %v598 = vadd.f32 %v532, %v597
        %v599 = vpop.f32.mrb[0].mxu0
        %600 = vdwg.mxu0
        %v601 = vmax.f32 %v587, 0.0
        %v602 = vmax.f32 %v590, 0.0
        %v603 = vmax.f32 %v595, 0.0
        %v604 = vmax.f32 %v598, 0.0
        %v605 = vpack.c.bf16 %v602, %v601
        %v606 = vpack.c.bf16 %v604, %v603
        %v607 = vld [vmem:[%s7] sm:$0xf]
        %v608 = vld [vmem:[%s7 + $0x4] sm:$0xf]
        %v609 = vld [vmem:[%s7 + $0x8] sm:$0xf]
        %v610 = vld [vmem:[%s7 + $0xc] sm:$0xf]
        %v611 = vld [vmem:[%s8] sm:$0x1]
        %v613 = vlaneseq
        %v614 = vshrl.u32 %v613, 7
        %v615 = vsub.s32 0, %v614
        %v616 = vrot.slane %v611, %v615
        %v622 = vunpack.c.l.b16 %v607
        %v623 = vunpack.c.l.b16 %v608
        %v624 = vunpack.c.l.b16 %v609
        %v625 = vunpack.c.l.b16 %v610
        %v626 = vpack.c.b16 %v623, %v622
        %v627 = vpack.c.b16 %v625, %v624
        %v631 = vsel %vm461, %v605, 0
        %v634 = vsel %vm461, %v606, 0
        %636 = vmatprep.subr.bf16.mxu0 0
        %637 = vmatpush1.bf16.msra.mxu0 %v626
        %638 = vmatprep.subr.bf16.mxu0 0
        %639 = vmatpush1.bf16.msra.mxu0 %v627
        %640 = vmatprep.subr.bf16.mxu0 0
        %641 = vmatpush1.bf16.msra.mxu0 0
        %642 = vmatprep.subr.bf16.mxu0 0
        %643 = vmatpush1.bf16.msra.mxu0 0
        %644 = vmatprep.subr.bf16.mxu0 0
        %645 = vmatpush1.bf16.msra.mxu0 0
        %646 = vmatprep.subr.bf16.mxu0 0
        %647 = vmatpush1.bf16.msra.mxu0 0
        %648 = vmatprep.subr.bf16.mxu0 0
        %649 = vmatpush1.bf16.msra.mxu0 0
        %650 = vmatprep.subr.bf16.mxu0 0
        %651 = vmatpush1.bf16.msra.mxu0 0
        %652 = vmatprep.subr.bf16.mxu0 0
        %653 = vmatpush1.bf16.msra.mxu0 0
        %654 = vmatprep.subr.bf16.mxu0 0
        %655 = vmatpush1.bf16.msra.mxu0 0
        %656 = vmatprep.subr.bf16.mxu0 0
        %657 = vmatpush1.bf16.msra.mxu0 0
        %658 = vmatprep.subr.bf16.mxu0 0
        %659 = vmatpush1.bf16.msra.mxu0 0
        %660 = vmatprep.subr.bf16.mxu0 0
        %661 = vmatpush1.bf16.msra.mxu0 0
        %662 = vmatprep.subr.bf16.mxu0 0
        %663 = vmatpush1.bf16.msra.mxu0 0
        %664 = vmatprep.subr.bf16.mxu0 0
        %665 = vmatpush1.bf16.msra.mxu0 0
        %666 = vmatprep.subr.bf16.mxu0 0
        %667 = vmatpush1.bf16.msra.mxu0 0
        %668 = vmatprep.mubr.bf16.mxu0 0
        %669 = vmatmul.mubr.bf16.gmra.mrb[0].mxu0 %v631
        %v670 = vpop.f32.mrb[0].mxu0
        %v671 = vadd.f32 %v616, %v670
        %v672 = vpop.f32.mrb[0].mxu0
        %v673 = vpop.f32.mrb[0].mxu0
        %v674 = vadd.f32 %v616, %v673
        %v675 = vpop.f32.mrb[0].mxu0
        %676 = vmatprep.mubr.bf16.mxu0 0
        %677 = vmatmul.mubr.bf16.gmra.mrb[0].mxu0 %v634
        %v678 = vpop.f32.mrb[0].mxu0
        %v679 = vadd.f32 %v616, %v678
        %v680 = vpop.f32.mrb[0].mxu0
        %v681 = vpop.f32.mrb[0].mxu0
        %v682 = vadd.f32 %v616, %v681
        %v683 = vpop.f32.mrb[0].mxu0
        %684 = vdwg.mxu0
        %v685 = vmul.f32 %v671, 0.5
        %v686 = vmul.f32 %v674, 0.5
        %v687 = vmul.f32 %v679, 0.5
        %v688 = vmul.f32 %v682, 0.5
        %v689 = vtanh.pop %v685
        %v690 = vtanh.pop %v686
        %v691 = vtanh.pop %v687
        %v692 = vtanh.pop %v688
        %v693 = vadd.f32 %v689, 1.0
        %v694 = vadd.f32 %v690, 1.0
        %v695 = vadd.f32 %v691, 1.0
        %v696 = vadd.f32 %v692, 1.0
        %v697 = vmul.f32 %v693, 0.5
        %v698 = vmul.f32 %v694, 0.5
        %v699 = vmul.f32 %v695, 0.5
        %v700 = vmul.f32 %v696, 0.5
        %701 = vst.msk [vmem:[%s334] sm:$0xff] %vm376, %v697
        %702 = vst.msk [vmem:[%s334 + $0x8] sm:$0xff] %vm376, %v698
        %703 = vst.msk [vmem:[%s334 + $0x10] sm:$0xff] %vm376, %v699
        %704 = vst.msk [vmem:[%s334 + $0x18] sm:$0xff] %vm376, %v700
        %s705 = sand.u32 %s222, 1
        %s706 = sand.u32 %s222, 1
        %s707 = smul.addr %s706, 32
        %s708 = scalar_lea.vmem [#allocation2], %s707
        // Predicated region
        $region57: #{tpu_custom_call.1} parent=55 // pred_check
          %p709 = pneg %p232
        $region58: #{tpu_custom_call.1} parent=55 // pred_check_branch
          %711 = sbr.rel (%p709) target = $region60
        $region59: #{tpu_custom_call.1} parent=55 // pred_region
          %s712 = smul.u32 4, %s20
          %s713 = ssub.s32 13, %s712
          %p714 = scmp.lt.s32.totalorder %s713, 4
          %s715 = scalar_select %p714, %s713, 4
          %s716 = smul.u32 128, %s715
          %p717 = scmp.ne.s32.totalorder 0, %s716
          %s718 = smul.addr %s712, 8
          %s719 = scalar_lea.vmem %s9, %s718
          // Predicated region
          $region61: #{tpu_custom_call.1} parent=59 // pred_check
            %p720 = pneg %p717
          $region62: #{tpu_custom_call.1} parent=59 // pred_check_branch
            %722 = sbr.rel (%p720) target = $region64
          $region63: #{tpu_custom_call.1} parent=59 // pred_region
            // Predicated region
            $region65: #{tpu_custom_call.1} parent=63 // pred_check
              _
            $region66: #{tpu_custom_call.1} parent=63 // pred_check_branch
              %724 = sbr.rel (0) target = $region68
            $region67: #{tpu_custom_call.1} parent=63 // pred_region
              // Predicated region
              $region87: #{tpu_custom_call.1} parent=67 // pred_check
                _
              $region88: #{tpu_custom_call.1} parent=67 // pred_check_branch
                %779 = sbr.rel (0) target = $region90
              $region89: #{tpu_custom_call.1} parent=67 // pred_region
                %s780 = sshrl.u32 %s715, 2
                // While loop
                $region91: #{tpu_custom_call.1} parent=89 // loop_pre_header
                  _
                $region92: #{tpu_custom_call.1} parent=89 // loop_header
                  %s782 = sphi 0, %s784
                  %p783 = scmp.ge.s32.totalorder %s782, %s780
                  %s787 = sphi 0, %s800
                  %s788 = sphi %s708, %s803
                  %s789 = sphi %s719, %s804
                $region93: #{tpu_custom_call.1} parent=89 // loop_header_branch
                  %786 = sbr.rel (%p783) target = $region97
                $region94: #{tpu_custom_call.1} parent=89 // loop_body
                  %v790 = vld [vmem:[%s788] sm:$0xff]
                  %791 = vst [vmem:[%s789] sm:$0xff] %v790
                  %v792 = vld [vmem:[%s788 + $0x8] sm:$0xff]
                  %793 = vst [vmem:[%s789 + $0x8] sm:$0xff] %v792
                  %v794 = vld [vmem:[%s788 + $0x10] sm:$0xff]
                  %795 = vst [vmem:[%s789 + $0x10] sm:$0xff] %v794
                  %v796 = vld [vmem:[%s788 + $0x18] sm:$0xff]
                  %797 = vst [vmem:[%s789 + $0x18] sm:$0xff] %v796
                  %s798 = sadd.s32 1, %s787
                  %p799 = scmp.ge.s32.totalorder %s798, %s780
                  %s800 = scalar_select %p799, 0, %s798
                  %s801 = smul.u32 %s800, 32
                  %s802 = smul.u32 %s800, 32
                  %s803 = scalar_lea.vmem %s708, %s801 [#allocation2]
                  %s804 = scalar_lea.vmem %s719, %s802
                $region95: #{tpu_custom_call.1} parent=89 // loop_footer
                  %s784 = sadd.s32 %s782, 1
                $region96: #{tpu_custom_call.1} parent=89 // loop_footer_branch
                  %781 = sbr.rel target = $region92
                $region97: #{tpu_custom_call.1} parent=89 // loop_exit
                  _
                %s805 = sshrl.u32 %s715, 2
                %s806 = sand.u32 %s715, 3
                %s807 = smul.u32 %s805, 4
                %s808 = smul.u32 8, %s807
                %s809 = scalar_lea.vmem %s708, %s808 [#allocation2]
                %s810 = smul.u32 8, %s807
                %s811 = scalar_lea.vmem %s719, %s810
                // While loop
                $region98: #{tpu_custom_call.1} parent=89 // loop_pre_header
                  _
                $region99: #{tpu_custom_call.1} parent=89 // loop_header
                  %s813 = sphi 0, %s815
                  %p814 = scmp.ge.s32.totalorder %s813, %s806
                  %s818 = sphi 0, %s825
                  %s819 = sphi %s809, %s828
                  %s820 = sphi %s811, %s829
                $region100: #{tpu_custom_call.1} parent=89 // loop_header_branch
                  %817 = sbr.rel (%p814) target = $region104
                $region101: #{tpu_custom_call.1} parent=89 // loop_body
                  %v821 = vld [vmem:[%s819] sm:$0xff]
                  %822 = vst [vmem:[%s820] sm:$0xff] %v821
                  %s823 = sadd.s32 1, %s818
                  %p824 = scmp.ge.s32.totalorder %s823, %s806
                  %s825 = scalar_select %p824, 0, %s823
                  %s826 = smul.u32 %s825, 8
                  %s827 = smul.u32 %s825, 8
                  %s828 = scalar_lea.vmem %s809, %s826 [#allocation2]
                  %s829 = scalar_lea.vmem %s811, %s827
                $region102: #{tpu_custom_call.1} parent=89 // loop_footer
                  %s815 = sadd.s32 %s813, 1
                $region103: #{tpu_custom_call.1} parent=89 // loop_footer_branch
                  %812 = sbr.rel target = $region99
                $region104: #{tpu_custom_call.1} parent=89 // loop_exit
                  _
              $region90: #{tpu_custom_call.1} parent=67 // pred_fallthru
                _
              // Predicated region
              $region105: #{tpu_custom_call.1} parent=67 // pred_check
                _
              $region106: #{tpu_custom_call.1} parent=67 // pred_check_branch
                %831 = sbr.rel target = $region108
              $region107: #{tpu_custom_call.1} parent=67 // pred_region
                _
              $region108: #{tpu_custom_call.1} parent=67 // pred_fallthru
                _
            $region68: #{tpu_custom_call.1} parent=63 // pred_fallthru
              _
            // Predicated region
            $region69: #{tpu_custom_call.1} parent=63 // pred_check
              _
            $region70: #{tpu_custom_call.1} parent=63 // pred_check_branch
              %726 = sbr.rel target = $region72
            $region71: #{tpu_custom_call.1} parent=63 // pred_region
              %s728 = sshrl.u32 %s715, 2
              // While loop
              $region73: #{tpu_custom_call.1} parent=71 // loop_pre_header
                _
              $region74: #{tpu_custom_call.1} parent=71 // loop_header
                %s730 = sphi 0, %s732
                %p731 = scmp.ge.s32.totalorder %s730, %s728
                %s735 = sphi 0, %s748
                %s736 = sphi %s708, %s751
                %s737 = sphi %s719, %s752
              $region75: #{tpu_custom_call.1} parent=71 // loop_header_branch
                %734 = sbr.rel (%p731) target = $region79
              $region76: #{tpu_custom_call.1} parent=71 // loop_body
                %v738 = vld [vmem:[%s736] sm:$0xff]
                %739 = vst [vmem:[%s737] sm:$0xff] %v738
                %v740 = vld [vmem:[%s736 + $0x8] sm:$0xff]
                %741 = vst [vmem:[%s737 + $0x8] sm:$0xff] %v740
                %v742 = vld [vmem:[%s736 + $0x10] sm:$0xff]
                %743 = vst [vmem:[%s737 + $0x10] sm:$0xff] %v742
                %v744 = vld [vmem:[%s736 + $0x18] sm:$0xff]
                %745 = vst [vmem:[%s737 + $0x18] sm:$0xff] %v744
                %s746 = sadd.s32 1, %s735
                %p747 = scmp.ge.s32.totalorder %s746, %s728
                %s748 = scalar_select %p747, 0, %s746
                %s749 = smul.u32 %s748, 32
                %s750 = smul.u32 %s748, 32
                %s751 = scalar_lea.vmem %s708, %s749 [#allocation2]
                %s752 = scalar_lea.vmem %s719, %s750
              $region77: #{tpu_custom_call.1} parent=71 // loop_footer
                %s732 = sadd.s32 %s730, 1
              $region78: #{tpu_custom_call.1} parent=71 // loop_footer_branch
                %729 = sbr.rel target = $region74
              $region79: #{tpu_custom_call.1} parent=71 // loop_exit
                _
              %s753 = sshrl.u32 %s715, 2
              %s754 = sand.u32 %s715, 3
              %s755 = smul.u32 %s753, 4
              %s756 = smul.u32 8, %s755
              %s757 = scalar_lea.vmem %s708, %s756 [#allocation2]
              %s758 = smul.u32 8, %s755
              %s759 = scalar_lea.vmem %s719, %s758
              // While loop
              $region80: #{tpu_custom_call.1} parent=71 // loop_pre_header
                _
              $region81: #{tpu_custom_call.1} parent=71 // loop_header
                %s761 = sphi 0, %s763
                %p762 = scmp.ge.s32.totalorder %s761, %s754
                %s766 = sphi 0, %s773
                %s767 = sphi %s757, %s776
                %s768 = sphi %s759, %s777
              $region82: #{tpu_custom_call.1} parent=71 // loop_header_branch
                %765 = sbr.rel (%p762) target = $region86
              $region83: #{tpu_custom_call.1} parent=71 // loop_body
                %v769 = vld [vmem:[%s767] sm:$0xff]
                %770 = vst [vmem:[%s768] sm:$0xff] %v769
                %s771 = sadd.s32 1, %s766
                %p772 = scmp.ge.s32.totalorder %s771, %s754
                %s773 = scalar_select %p772, 0, %s771
                %s774 = smul.u32 %s773, 8
                %s775 = smul.u32 %s773, 8
                %s776 = scalar_lea.vmem %s757, %s774 [#allocation2]
                %s777 = scalar_lea.vmem %s759, %s775
              $region84: #{tpu_custom_call.1} parent=71 // loop_footer
                %s763 = sadd.s32 %s761, 1
              $region85: #{tpu_custom_call.1} parent=71 // loop_footer_branch
                %760 = sbr.rel target = $region81
              $region86: #{tpu_custom_call.1} parent=71 // loop_exit
                _
            $region72: #{tpu_custom_call.1} parent=63 // pred_fallthru
              _
          $region64: #{tpu_custom_call.1} parent=59 // pred_fallthru
            _
          %832 = vnop
        $region60: #{tpu_custom_call.1} parent=55 // pred_fallthru
          _
      $region56: #{tpu_custom_call.1} parent=5 // pred_fallthru
        _
      %p833 = scmp.le.s32.totalorder 2, %s15
      // Predicated region
      $region109: #{tpu_custom_call.1} parent=5 // pred_check
        %p834 = pneg %p833
      $region110: #{tpu_custom_call.1} parent=5 // pred_check_branch
        %836 = sbr.rel (%p834) target = $region112
      $region111: #{tpu_custom_call.1} parent=5 // pred_region
        %s837 = ssub.s32 %s15, 2
        // Predicated region
        $region113: #{tpu_custom_call.1} parent=111 // pred_check
          %p838 = pneg %p238
        $region114: #{tpu_custom_call.1} parent=111 // pred_check_branch
          %840 = sbr.rel (%p838) target = $region116
        $region115: #{tpu_custom_call.1} parent=111 // pred_region
          %s841 = sand.u32 %s223, 1
          %s842 = sand.u32 %s223, 1
          %s843 = smul.addr %s842, 32
          %s844 = scalar_lea.vmem [#allocation2], %s843
        $region116: #{tpu_custom_call.1} parent=111 // pred_fallthru
          _
      $region112: #{tpu_custom_call.1} parent=5 // pred_fallthru
        _
    $region6: #{tpu_custom_call.1} parent=1 // loop_footer
      %s19 = sadd.s32 1, %s15
    $region7: #{tpu_custom_call.1} parent=1 // loop_footer_branch
      %14 = sbr.rel target = $region3
    $region8: #{tpu_custom_call.1} parent=1 // loop_exit
      _

</llo_original>
